<compile_context>
chip_gen: v6e
topology: v6e:2x2x1
jax: 0.10.0
libtpu: 0.0.40
codegen_flags: <defaults>
</compile_context>

<pallas_src>
import jax
import jax.numpy as jnp
import numpy as np
from jax.experimental import pallas as pl
from jax.experimental.pallas import tpu as pltpu


def _round_up(x, m):
    return ((x + m - 1) // m) * m


# ----------------------------- Pallas kernel --------------------------------

def _mlp_kernel(a_ref, s_ref, w1a_ref, w1s_ref, b1_ref,
                w2_ref, b2_ref, w3_ref, b3_ref, o_ref):
    """Fused: relu(a@W1a + s@W1s + b1) -> relu(@W2+b2) -> @W3+b3 (lane-padded)."""
    a = a_ref[...].astype(jnp.bfloat16)
    s = s_ref[...].astype(jnp.bfloat16)

    # Layer 1: split matmul replaces the concat(action, state) @ W1.
    h1 = (jnp.dot(a, w1a_ref[...], preferred_element_type=jnp.float32)
          + jnp.dot(s, w1s_ref[...], preferred_element_type=jnp.float32)
          + b1_ref[...])
    h1 = jnp.maximum(h1, 0.0)

    # Layer 2.
    h2 = jnp.dot(h1.astype(jnp.bfloat16), w2_ref[...],
                 preferred_element_type=jnp.float32) + b2_ref[...]
    h2 = jnp.maximum(h2, 0.0)

    # Layer 3 (output features zero-padded to a multiple of 128 lanes).
    h3 = jnp.dot(h2.astype(jnp.bfloat16), w3_ref[...],
                 preferred_element_type=jnp.float32) + b3_ref[...]
    o_ref[...] = h3.astype(o_ref.dtype)


def _fused_mlp(action, state, w1_a, w1_s, b1, w2, b2, w3_p, b3_p):
    """Run the fused MLP Pallas kernel. action:(B,A) state:(B,S) -> (B, out_pad) f32."""
    B = state.shape[0]
    A = action.shape[1]
    S = state.shape[1]
    H = w2.shape[0]
    out_pad = w3_p.shape[1]

    # Batch tiling: at least one sublane tile (8 rows), up to 256-row tiles.
    B_pad = _round_up(B, 8)
    TB = min(256, B_pad)
    B_pad = _round_up(B_pad, TB)
    grid = (B_pad // TB,)

    if B_pad != B:
        pad = B_pad - B
        action = jnp.pad(action, ((0, pad), (0, 0)))
        state = jnp.pad(state, ((0, pad), (0, 0)))

    in_dim = A + S
    flops = 2 * B_pad * (in_dim * H + H * H + H * out_pad)
    bytes_accessed = (action.size * 4 + state.size * 4
                      + (w1_a.size + w1_s.size + w2.size + w3_p.size) * 2
                      + (b1.size + b2.size + b3_p.size) * 4
                      + B_pad * out_pad * 4)

    out = pl.pallas_call(
        _mlp_kernel,
        out_shape=jax.ShapeDtypeStruct((B_pad, out_pad), jnp.float32),
        grid=grid,
        in_specs=[
            pl.BlockSpec((TB, A), lambda i: (i, 0)),        # action tile
            pl.BlockSpec((TB, S), lambda i: (i, 0)),        # state tile
            pl.BlockSpec((A, H), lambda i: (0, 0)),         # W1_action (resident)
            pl.BlockSpec((S, H), lambda i: (0, 0)),         # W1_state  (resident)
            pl.BlockSpec((1, H), lambda i: (0, 0)),         # b1
            pl.BlockSpec((H, H), lambda i: (0, 0)),         # W2
            pl.BlockSpec((1, H), lambda i: (0, 0)),         # b2
            pl.BlockSpec((H, out_pad), lambda i: (0, 0)),   # W3 (lane-padded)
            pl.BlockSpec((1, out_pad), lambda i: (0, 0)),   # b3 (lane-padded)
        ],
        out_specs=pl.BlockSpec((TB, out_pad), lambda i: (i, 0)),
        compiler_params=pltpu.CompilerParams(
            dimension_semantics=("parallel",)),
        cost_estimate=pl.CostEstimate(
            flops=flops, transcendentals=0, bytes_accessed=bytes_accessed),
    )(action, state, w1_a, w1_s, b1, w2, b2, w3_p, b3_p)

    return out[:B]


# --------------------------- Module-like wrapper -----------------------------

class NextStateQuantileNetworkPallas:
    """JAX/Pallas port of NextStateQuantileNetwork (forward pass only)."""

    HIDDEN = 256

    def __init__(self, state_dim, action_dim, num_quantiles, key):
        self.state_dim = state_dim
        self.action_dim = action_dim
        self.num_quantiles = num_quantiles

        in_dim = state_dim + action_dim
        out_dim = state_dim * num_quantiles
        out_pad = _round_up(out_dim, 128)
        self.out_dim = out_dim
        self.out_pad = out_pad
        H = self.HIDDEN

        ks = jax.random.split(key, 6)

        def init_linear(kw, kb, fan_in, fan_out):
            # PyTorch nn.Linear default: U(-1/sqrt(fan_in), 1/sqrt(fan_in)).
            bound = 1.0 / np.sqrt(fan_in)
            w = jax.random.uniform(kw, (fan_in, fan_out), jnp.float32, -bound, bound)
            b = jax.random.uniform(kb, (1, fan_out), jnp.float32, -bound, bound)
            return w, b

        w1, b1 = init_linear(ks[0], ks[1], in_dim, H)
        w2, b2 = init_linear(ks[2], ks[3], H, H)
        w3, b3 = init_linear(ks[4], ks[5], H, out_dim)

        # Split W1 so the kernel can compute action@W1_a + state@W1_s (the
        # PyTorch forward concatenates (action, state), so action rows first).
        # Weights stored bf16 (MXU operands); biases stay f32.
        self.w1_a = w1[:action_dim].astype(jnp.bfloat16)
        self.w1_s = w1[action_dim:].astype(jnp.bfloat16)
        self.b1 = b1
        self.w2 = w2.astype(jnp.bfloat16)
        self.b2 = b2
        # Zero-pad layer-3 weights/bias to a lane-dense (multiple-of-128) width.
        self.w3_p = jnp.pad(w3, ((0, 0), (0, out_pad - out_dim))).astype(jnp.bfloat16)
        self.b3_p = jnp.pad(b3, ((0, 0), (0, out_pad - out_dim)))

    def forward(self, state, action):
        if state.ndim == 1:
            a = action[None, :]
            s = state[None, :]
        else:
            a = action
            s = state

        out = _fused_mlp(a, s, self.w1_a, self.w1_s, self.b1,
                         self.w2, self.b2, self.w3_p, self.b3_p)
        out = out[:, :self.out_dim]
        # Matches x.view(-1, num_quantiles, state.size(-1))
        return out.reshape(-1, self.num_quantiles, state.shape[-1])

    __call__ = forward


# ----------------------------- Reference check -------------------------------

def _reference_forward(net, state, action):
    """Pure-JAX reference mimicking the kernel's bf16-operand / f32-accum path."""
    if state.ndim == 1:
        a = action[None, :]
        s = state[None, :]
    else:
        a, s = action, state

    def bf(x):
        return x.astype(jnp.bfloat16).astype(jnp.float32)

    w1a = net.w1_a.astype(jnp.float32)
    w1s = net.w1_s.astype(jnp.float32)
    w2 = net.w2.astype(jnp.float32)
    w3 = net.w3_p[:, :net.out_dim].astype(jnp.float32)
    b3 = net.b3_p[:, :net.out_dim]

    h1 = jax.nn.relu(bf(a) @ w1a + bf(s) @ w1s + net.b1)
    h2 = jax.nn.relu(bf(h1) @ w2 + net.b2)
    h3 = bf(h2) @ w3 + b3
    return h3.reshape(-1, net.num_quantiles, state.shape[-1])


if __name__ == "__main__":
    key = jax.random.PRNGKey(0)
    k_param, k_state, k_action = jax.random.split(key, 3)

    batch = 4
    state_dim = 6
    action_dim = 2
    num_quantiles = 8

    net = NextStateQuantileNetworkPallas(state_dim, action_dim, num_quantiles, k_param)

    state = jax.random.normal(k_state, (batch, state_dim), jnp.float32)
    action = jax.random.normal(k_action, (batch, action_dim), jnp.float32)

    out = net(state, action)
    out = jax.block_until_ready(out)
    assert out.shape == (batch, num_quantiles, state_dim), out.shape

    ref = _reference_forward(net, state, action)
    np.testing.assert_allclose(np.asarray(out), np.asarray(ref), rtol=2e-2, atol=2e-2)

    # Also exercise the 1-D (single sample) path, as in the PyTorch module.
    out1 = jax.block_until_ready(net(state[0], action[0]))
    assert out1.shape == (1, num_quantiles, state_dim), out1.shape

    # And a batch large enough to use multiple grid tiles.
    big_state = jax.random.normal(k_state, (1000, state_dim), jnp.float32)
    big_action = jax.random.normal(k_action, (1000, action_dim), jnp.float32)
    out_big = jax.block_until_ready(net(big_state, big_action))
    assert out_big.shape == (1000, num_quantiles, state_dim), out_big.shape
    ref_big = _reference_forward(net, big_state, big_action)
    np.testing.assert_allclose(np.asarray(out_big), np.asarray(ref_big),
                               rtol=2e-2, atol=2e-2)

    print("KERNEL_OK")
</pallas_src>

<mosaic_0001>
module attributes {stable_mosaic.version = 11 : i64} {
  func.func @_mlp_kernel(%arg0: i32, %arg1: memref<8x2xf32, #tpu.memory_space<vmem>>, %arg2: memref<8x6xf32, #tpu.memory_space<vmem>>, %arg3: memref<2x256xbf16, #tpu.memory_space<vmem>>, %arg4: memref<6x256xbf16, #tpu.memory_space<vmem>>, %arg5: memref<1x256xf32, #tpu.memory_space<vmem>>, %arg6: memref<256x256xbf16, #tpu.memory_space<vmem>>, %arg7: memref<1x256xf32, #tpu.memory_space<vmem>>, %arg8: memref<256x128xbf16, #tpu.memory_space<vmem>>, %arg9: memref<1x128xf32, #tpu.memory_space<vmem>>, %arg10: memref<8x128xf32, #tpu.memory_space<vmem>>) attributes {dimension_semantics = [#tpu.dimension_semantics<parallel>], iteration_bounds = array<i64: 1>, scalar_prefetch = 0 : i64, scratch_operands = 0 : i64, tpu.core_type = #tpu.core_type<tc>, window_params = [{transform_indices = @transform_0, window_bounds = array<i64: 8, 2>}, {transform_indices = @transform_1, window_bounds = array<i64: 8, 6>}, {pipeline_mode = #tpu.pipeline_mode<synchronous>, transform_indices = @transform_2, window_bounds = array<i64: 2, 256>}, {pipeline_mode = #tpu.pipeline_mode<synchronous>, transform_indices = @transform_3, window_bounds = array<i64: 6, 256>}, {pipeline_mode = #tpu.pipeline_mode<synchronous>, transform_indices = @transform_4, window_bounds = array<i64: 1, 256>}, {pipeline_mode = #tpu.pipeline_mode<synchronous>, transform_indices = @transform_5, window_bounds = array<i64: 256, 256>}, {pipeline_mode = #tpu.pipeline_mode<synchronous>, transform_indices = @transform_6, window_bounds = array<i64: 1, 256>}, {pipeline_mode = #tpu.pipeline_mode<synchronous>, transform_indices = @transform_7, window_bounds = array<i64: 256, 128>}, {pipeline_mode = #tpu.pipeline_mode<synchronous>, transform_indices = @transform_8, window_bounds = array<i64: 1, 128>}, {transform_indices = @transform_9, window_bounds = array<i64: 8, 128>}]} {
    %c0 = arith.constant 0 : index
    %c0_0 = arith.constant 0 : index
    %0 = vector.load %arg1[%c0, %c0_0] : memref<8x2xf32, #tpu.memory_space<vmem>>, vector<8x2xf32>
    %1 = arith.truncf %0 : vector<8x2xf32> to vector<8x2xbf16>
    %c0_1 = arith.constant 0 : index
    %c0_2 = arith.constant 0 : index
    %2 = vector.load %arg2[%c0_1, %c0_2] : memref<8x6xf32, #tpu.memory_space<vmem>>, vector<8x6xf32>
    %3 = arith.truncf %2 : vector<8x6xf32> to vector<8x6xbf16>
    %c0_3 = arith.constant 0 : index
    %c0_4 = arith.constant 0 : index
    %4 = vector.load %arg3[%c0_3, %c0_4] : memref<2x256xbf16, #tpu.memory_space<vmem>>, vector<2x256xbf16>
    %cst = arith.constant dense<0.000000e+00> : vector<8x256xf32>
    %5 = tpu.matmul %1, %4, %cst {dimension_numbers = #tpu.dot_dimension_numbers<[1], [0], [0], [1], [0, 0, 1, 1], [], []>} : vector<8x2xbf16>, vector<2x256xbf16>, vector<8x256xf32> -> vector<8x256xf32>
    %c0_5 = arith.constant 0 : index
    %c0_6 = arith.constant 0 : index
    %6 = vector.load %arg4[%c0_5, %c0_6] : memref<6x256xbf16, #tpu.memory_space<vmem>>, vector<6x256xbf16>
    %cst_7 = arith.constant dense<0.000000e+00> : vector<8x256xf32>
    %7 = tpu.matmul %3, %6, %cst_7 {dimension_numbers = #tpu.dot_dimension_numbers<[1], [0], [0], [1], [0, 0, 1, 1], [], []>} : vector<8x6xbf16>, vector<6x256xbf16>, vector<8x256xf32> -> vector<8x256xf32>
    %8 = arith.addf %5, %7 : vector<8x256xf32>
    %c0_8 = arith.constant 0 : index
    %c0_9 = arith.constant 0 : index
    %9 = vector.load %arg5[%c0_8, %c0_9] : memref<1x256xf32, #tpu.memory_space<vmem>>, vector<1x256xf32>
    %10 = vector.broadcast %9 : vector<1x256xf32> to vector<8x256xf32>
    %11 = arith.addf %8, %10 : vector<8x256xf32>
    %cst_10 = arith.constant 0.000000e+00 : f32
    %12 = vector.broadcast %cst_10 : f32 to vector<8x256xf32>
    %13 = arith.maximumf %11, %12 : vector<8x256xf32>
    %14 = arith.truncf %13 : vector<8x256xf32> to vector<8x256xbf16>
    %c0_11 = arith.constant 0 : index
    %c0_12 = arith.constant 0 : index
    %15 = vector.load %arg6[%c0_11, %c0_12] : memref<256x256xbf16, #tpu.memory_space<vmem>>, vector<256x256xbf16>
    %cst_13 = arith.constant dense<0.000000e+00> : vector<8x256xf32>
    %16 = tpu.matmul %14, %15, %cst_13 {dimension_numbers = #tpu.dot_dimension_numbers<[1], [0], [0], [1], [0, 0, 1, 1], [], []>} : vector<8x256xbf16>, vector<256x256xbf16>, vector<8x256xf32> -> vector<8x256xf32>
    %c0_14 = arith.constant 0 : index
    %c0_15 = arith.constant 0 : index
    %17 = vector.load %arg7[%c0_14, %c0_15] : memref<1x256xf32, #tpu.memory_space<vmem>>, vector<1x256xf32>
    %18 = vector.broadcast %17 : vector<1x256xf32> to vector<8x256xf32>
    %19 = arith.addf %16, %18 : vector<8x256xf32>
    %cst_16 = arith.constant 0.000000e+00 : f32
    %20 = vector.broadcast %cst_16 : f32 to vector<8x256xf32>
    %21 = arith.maximumf %19, %20 : vector<8x256xf32>
    %22 = arith.truncf %21 : vector<8x256xf32> to vector<8x256xbf16>
    %c0_17 = arith.constant 0 : index
    %c0_18 = arith.constant 0 : index
    %23 = vector.load %arg8[%c0_17, %c0_18] : memref<256x128xbf16, #tpu.memory_space<vmem>>, vector<256x128xbf16>
    %cst_19 = arith.constant dense<0.000000e+00> : vector<8x128xf32>
    %24 = tpu.matmul %22, %23, %cst_19 {dimension_numbers = #tpu.dot_dimension_numbers<[1], [0], [0], [1], [0, 0, 1, 1], [], []>} : vector<8x256xbf16>, vector<256x128xbf16>, vector<8x128xf32> -> vector<8x128xf32>
    %c0_20 = arith.constant 0 : index
    %c0_21 = arith.constant 0 : index
    %25 = vector.load %arg9[%c0_20, %c0_21] : memref<1x128xf32, #tpu.memory_space<vmem>>, vector<1x128xf32>
    %26 = vector.broadcast %25 : vector<1x128xf32> to vector<8x128xf32>
    %27 = arith.addf %24, %26 : vector<8x128xf32>
    %c0_22 = arith.constant 0 : index
    %c0_23 = arith.constant 0 : index
    %28 = vector.load %arg10[%c0_22, %c0_23] : memref<8x128xf32, #tpu.memory_space<vmem>>, vector<8x128xf32>
    tpu.vector_store %arg10[%c0_22, %c0_23], %27 {strides = array<i32>} : memref<8x128xf32, #tpu.memory_space<vmem>>, vector<8x128xf32>,
    return
  }
  func.func @transform_0(%arg0: i32) -> (i32, i32) {
    %c0_i32 = arith.constant 0 : i32
    %c0_i32_0 = arith.constant 0 : i32
    return %arg0, %c0_i32 : i32, i32
  }
  func.func @transform_1(%arg0: i32) -> (i32, i32) {
    %c0_i32 = arith.constant 0 : i32
    %c0_i32_0 = arith.constant 0 : i32
    return %arg0, %c0_i32 : i32, i32
  }
  func.func @transform_2(%arg0: i32) -> (i32, i32) {
    %c0_i32 = arith.constant 0 : i32
    %c0_i32_0 = arith.constant 0 : i32
    %c0_i32_1 = arith.constant 0 : i32
    return %c0_i32, %c0_i32_0 : i32, i32
  }
  func.func @transform_3(%arg0: i32) -> (i32, i32) {
    %c0_i32 = arith.constant 0 : i32
    %c0_i32_0 = arith.constant 0 : i32
    %c0_i32_1 = arith.constant 0 : i32
    return %c0_i32, %c0_i32_0 : i32, i32
  }
  func.func @transform_4(%arg0: i32) -> (i32, i32) {
    %c0_i32 = arith.constant 0 : i32
    %c0_i32_0 = arith.constant 0 : i32
    %c0_i32_1 = arith.constant 0 : i32
    return %c0_i32, %c0_i32_0 : i32, i32
  }
  func.func @transform_5(%arg0: i32) -> (i32, i32) {
    %c0_i32 = arith.constant 0 : i32
    %c0_i32_0 = arith.constant 0 : i32
    %c0_i32_1 = arith.constant 0 : i32
    return %c0_i32, %c0_i32_0 : i32, i32
  }
  func.func @transform_6(%arg0: i32) -> (i32, i32) {
    %c0_i32 = arith.constant 0 : i32
    %c0_i32_0 = arith.constant 0 : i32
    %c0_i32_1 = arith.constant 0 : i32
    return %c0_i32, %c0_i32_0 : i32, i32
  }
  func.func @transform_7(%arg0: i32) -> (i32, i32) {
    %c0_i32 = arith.constant 0 : i32
    %c0_i32_0 = arith.constant 0 : i32
    %c0_i32_1 = arith.constant 0 : i32
    return %c0_i32, %c0_i32_0 : i32, i32
  }
  func.func @transform_8(%arg0: i32) -> (i32, i32) {
    %c0_i32 = arith.constant 0 : i32
    %c0_i32_0 = arith.constant 0 : i32
    %c0_i32_1 = arith.constant 0 : i32
    return %c0_i32, %c0_i32_0 : i32, i32
  }
  func.func @transform_9(%arg0: i32) -> (i32, i32) {
    %c0_i32 = arith.constant 0 : i32
    %c0_i32_0 = arith.constant 0 : i32
    return %arg0, %c0_i32 : i32, i32
  }
}

</mosaic_0001>

<llo_original>
// kernel: tpu_custom_call.1
$region0: #{tpu_custom_call.1}
  #allocation0 [shape = 'u32[]', space=smem, size = 0x4, offset = 0x4, fixed_abs, tag = 'smem constant byte address 0x4 - core index']
  #allocation1 [shape = 'u32[144,128]{1,0:T(1,128)}', space=vmem, size = 0x12000, scoped, tag = 'internal scratch']
  %s0 = inlined_call_operand.vmem [shape: f32[8,2], index: 0, kind: input, shape index: {}]
  %s1 = inlined_call_operand.vmem [shape: f32[8,6], index: 1, kind: input, shape index: {}]
  %s2 = inlined_call_operand.vmem [shape: bf16[2,256], index: 2, kind: input, shape index: {}]
  %s3 = inlined_call_operand.hbm [shape: bf16[6,256], index: 3, kind: input, shape index: {}]
  %s4 = inlined_call_operand.vmem [shape: f32[1,256], index: 4, kind: input, shape index: {}]
  %s5 = inlined_call_operand.hbm [shape: bf16[256,256], index: 5, kind: input, shape index: {}]
  %s6 = inlined_call_operand.vmem [shape: f32[1,256], index: 6, kind: input, shape index: {}]
  %s7 = inlined_call_operand.hbm [shape: bf16[256,128], index: 7, kind: input, shape index: {}]
  %s8 = inlined_call_operand.vmem [shape: f32[1,128], index: 8, kind: input, shape index: {}]
  %s9 = inlined_call_operand.hbm [shape: f32[8,128], index: 9, kind: output, shape index: {}]
  %s10 = sld [smem:[#allocation0]]
  $region58: #{tpu_custom_call.1} parent=0
    _
  %s12 = ssub.s32 1, %s10
  %s13 = scalar_select 0, %s12, %s10
  $region1: #{tpu_custom_call.1} parent=0
    #allocation2 [shape = 'u8[4096]{0}', space=vmem, size = 0x1000, scoped, tag = 'input window, operand 3, single buffered']
    #allocation3 [shape = 's32[1]{0}', space=sflag, size = 0x4, scoped, tag = 'scoped memory for tpu_custom_call.1']
    #allocation4 [shape = 's32[1]{0}', space=sflag, size = 0x4, scoped, tag = 'scoped memory for tpu_custom_call.1']
    #allocation5 [shape = 'u8[131072]{0}', space=vmem, size = 0x20000, scoped, tag = 'input window, operand 5, single buffered']
    #allocation6 [shape = 's32[1]{0}', space=sflag, size = 0x4, scoped, tag = 'scoped memory for tpu_custom_call.1']
    #allocation7 [shape = 'u8[65536]{0}', space=vmem, size = 0x10000, scoped, tag = 'input window, operand 7, single buffered']
    #allocation8 [shape = 'u8[4096]{0}', space=vmem, size = 0x1000, scoped, tag = 'output window, operand 0, single buffered']
    %14 = vsyncpa [#allocation3], 0
    %15 = vsyncpa [#allocation6], 0
    %16 = vsyncpa [#allocation4], 0
    // Predicated region
    $region2: #{tpu_custom_call.1} parent=1 // pred_check
      _
    $region3: #{tpu_custom_call.1} parent=1 // pred_check_branch
      %18 = sbr.rel (0) target = $region5
    $region4: #{tpu_custom_call.1} parent=1 // pred_region
      _
    $region5: #{tpu_custom_call.1} parent=1 // pred_fallthru
      _
    // Predicated region
    $region6: #{tpu_custom_call.1} parent=1 // pred_check
      _
    $region7: #{tpu_custom_call.1} parent=1 // pred_check_branch
      %20 = sbr.rel (0) target = $region9
    $region8: #{tpu_custom_call.1} parent=1 // pred_region
      _
    $region9: #{tpu_custom_call.1} parent=1 // pred_fallthru
      _
    // Predicated region
    $region10: #{tpu_custom_call.1} parent=1 // pred_check
      _
    $region11: #{tpu_custom_call.1} parent=1 // pred_check_branch
      %22 = sbr.rel (0) target = $region13
    $region12: #{tpu_custom_call.1} parent=1 // pred_region
      _
    $region13: #{tpu_custom_call.1} parent=1 // pred_fallthru
      _
    // Predicated region
    $region14: #{tpu_custom_call.1} parent=1 // pred_check
      _
    $region15: #{tpu_custom_call.1} parent=1 // pred_check_branch
      %24 = sbr.rel (0) target = $region17
    $region16: #{tpu_custom_call.1} parent=1 // pred_region
      %s26 = ssub.s32 128, 128
      %27 = vsyncadd [#allocation3], %s26
      %s29 = sshll.u32 [#allocation2], 4
      %s30 = int_to_ptr.vmem [resolvable:$true] %s29
      %32 = dma.hbm_to_vmem [thread:$0]  %s3, 128, %s30, [#allocation3]
    $region17: #{tpu_custom_call.1} parent=1 // pred_fallthru
      _
    // Predicated region
    $region18: #{tpu_custom_call.1} parent=1 // pred_check
      _
    $region19: #{tpu_custom_call.1} parent=1 // pred_check_branch
      %34 = sbr.rel (0) target = $region21
    $region20: #{tpu_custom_call.1} parent=1 // pred_region
      _
    $region21: #{tpu_custom_call.1} parent=1 // pred_fallthru
      _
    // Predicated region
    $region22: #{tpu_custom_call.1} parent=1 // pred_check
      _
    $region23: #{tpu_custom_call.1} parent=1 // pred_check_branch
      %36 = sbr.rel (0) target = $region25
    $region24: #{tpu_custom_call.1} parent=1 // pred_region
      %s38 = ssub.s32 4096, 4096
      %39 = vsyncadd [#allocation6], %s38
      %s40 = sshll.u32 [#allocation5], 4
      %s41 = int_to_ptr.vmem [resolvable:$true] %s40
      %46 = dma.hbm_to_vmem [thread:$0]  %s5, 4096, %s41, [#allocation6], 128, 128, 8
    $region25: #{tpu_custom_call.1} parent=1 // pred_fallthru
      _
    // Predicated region
    $region26: #{tpu_custom_call.1} parent=1 // pred_check
      _
    $region27: #{tpu_custom_call.1} parent=1 // pred_check_branch
      %48 = sbr.rel (0) target = $region29
    $region28: #{tpu_custom_call.1} parent=1 // pred_region
      _
    $region29: #{tpu_custom_call.1} parent=1 // pred_fallthru
      _
    // Predicated region
    $region30: #{tpu_custom_call.1} parent=1 // pred_check
      _
    $region31: #{tpu_custom_call.1} parent=1 // pred_check_branch
      %50 = sbr.rel (0) target = $region33
    $region32: #{tpu_custom_call.1} parent=1 // pred_region
      %s52 = ssub.s32 2048, 2048
      %53 = vsyncadd [#allocation6], %s52
      %s54 = sshll.u32 [#allocation7], 4
      %s55 = int_to_ptr.vmem [resolvable:$true] %s54
      %60 = dma.hbm_to_vmem [thread:$0]  %s7, 2048, %s55, [#allocation6], 64, 64, 4
    $region33: #{tpu_custom_call.1} parent=1 // pred_fallthru
      _
    // Predicated region
    $region34: #{tpu_custom_call.1} parent=1 // pred_check
      _
    $region35: #{tpu_custom_call.1} parent=1 // pred_check_branch
      %62 = sbr.rel (0) target = $region37
    $region36: #{tpu_custom_call.1} parent=1 // pred_region
      _
    $region37: #{tpu_custom_call.1} parent=1 // pred_fallthru
      _
    // Predicated region
    $region38: #{tpu_custom_call.1} parent=1 // pred_check
      _
    $region39: #{tpu_custom_call.1} parent=1 // pred_check_branch
      %64 = sbr.rel (0) target = $region41
    $region40: #{tpu_custom_call.1} parent=1 // pred_region
      %65 = dma.done [#allocation3], 128
    $region41: #{tpu_custom_call.1} parent=1 // pred_fallthru
      _
    // Predicated region
    $region42: #{tpu_custom_call.1} parent=1 // pred_check
      _
    $region43: #{tpu_custom_call.1} parent=1 // pred_check_branch
      %67 = sbr.rel (0) target = $region45
    $region44: #{tpu_custom_call.1} parent=1 // pred_region
      %68 = dma.done [#allocation6], 4096
    $region45: #{tpu_custom_call.1} parent=1 // pred_fallthru
      _
    // Predicated region
    $region46: #{tpu_custom_call.1} parent=1 // pred_check
      _
    $region47: #{tpu_custom_call.1} parent=1 // pred_check_branch
      %70 = sbr.rel (0) target = $region49
    $region48: #{tpu_custom_call.1} parent=1 // pred_region
      %71 = dma.done [#allocation6], 2048
    $region49: #{tpu_custom_call.1} parent=1 // pred_fallthru
      _
    %v73 = vld [vmem:[%s0] sm:$0xff]
    %v74 = vpack.c.bf16 %v73, %v73
    %v75 = vld [vmem:[%s1] sm:$0xff]
    %v76 = vpack.c.bf16 %v75, %v75
    %v77 = vld [vmem:[%s2] sm:$0x3]
    %v78 = vld [vmem:[#allocation2] sm:$0x77]
    %v80 = vunpack.c.l.b16 %v78
    %v81 = vunpack.c.h.b16 %v78
    %v82 = vpack.c.b16 %v80, %v80
    %v83 = vpack.c.b16 %v81, %v81
    %vm84 = vcmask 48128
    %v86 = vsel %vm84, %v76, 0
    %vm88 = vcmask 1042432
    %v90 = vsel %vm88, %v82, 0
    %v93 = vsel %vm88, %v83, 0
    %95 = vmatprep.subr.bf16.mxu0 0
    %96 = vmatpush1.bf16.msra.mxu0 0
    %97 = vmatprep.subr.bf16.mxu0 0
    %98 = vmatpush1.bf16.msra.mxu0 0
    %99 = vmatprep.subr.bf16.mxu0 0
    %100 = vmatpush1.bf16.msra.mxu0 0
    %101 = vmatprep.subr.bf16.mxu0 0
    %102 = vmatpush1.bf16.msra.mxu0 0
    %103 = vmatprep.subr.bf16.mxu0 0
    %104 = vmatpush1.bf16.msra.mxu0 0
    %105 = vmatprep.subr.bf16.mxu0 0
    %106 = vmatpush1.bf16.msra.mxu0 0
    %107 = vmatprep.subr.bf16.mxu0 0
    %108 = vmatpush1.bf16.msra.mxu0 0
    %109 = vmatprep.subr.bf16.mxu0 %v93
    %110 = vmatpush1.bf16.msra.mxu0 %v90
    %111 = vmatprep.subr.bf16.mxu0 0
    %112 = vmatpush2.bf16.msra.mxu0 0
    %113 = vmatprep.subr.bf16.mxu0 0
    %114 = vmatpush2.bf16.msra.mxu0 0
    %115 = vmatprep.subr.bf16.mxu0 0
    %116 = vmatpush2.bf16.msra.mxu0 0
    %117 = vmatprep.subr.bf16.mxu0 0
    %118 = vmatpush2.bf16.msra.mxu0 0
    %119 = vmatprep.subr.bf16.mxu0 0
    %120 = vmatpush2.bf16.msra.mxu0 0
    %121 = vmatprep.subr.bf16.mxu0 0
    %122 = vmatpush2.bf16.msra.mxu0 0
    %123 = vmatprep.subr.bf16.mxu0 0
    %124 = vmatpush2.bf16.msra.mxu0 0
    %125 = vmatprep.subr.bf16.mxu0 0
    %126 = vmatpush2.bf16.msra.mxu0 0
    %127 = vmatprep.mubr.bf16.mxu0 0
    %128 = vmatmul.mubr.bf16.gmra.mxu0 %v86
    %v129 = vpop.f32.mrf.mxu0
    %v130 = vadd.f32 0.0, %v129
    %v131 = vpop.f32.mrf.mxu0
    %v132 = vadd.f32 0.0, %v131
    %v133 = vpop.f32.mrf.mxu0
    %v134 = vpop.f32.mrf.mxu0
    %135 = vdwg.mxu0
    %v138 = vunpack.c.l.s4 1966171168
    %v139 = vunpack.c.0.s8 %v138
    %v140 = vlaneseq
    %v141 = vshrl.u32 %v140, 7
    %v142 = vsub.s32 %v139, %v141
    %v143 = vrot.slane %v77, %v142
    %v144 = vcombine.high %v143, %v143
    %v146 = vunpack.c.l.s4 1966171168
    %v147 = vunpack.c.0.s8 %v146
    %v148 = vlaneseq
    %v149 = vshrl.u32 %v148, 7
    %v150 = vsub.s32 %v147, %v149
    %v151 = vrot.slane %v143, %v150
    %v153 = vunpack.c.l.s4 1966171168
    %v154 = vunpack.c.0.s8 %v153
    %v155 = vlaneseq
    %v156 = vshrl.u32 %v155, 7
    %v157 = vsub.s32 %v154, %v156
    %v158 = vrot.slane %v144, %v157
    %vm159 = vcmask 15360
    %v161 = vsel %vm159, %v74, 0
    %vm163 = vcmask 1040384
    %v165 = vsel %vm163, %v151, 0
    %v168 = vsel %vm163, %v158, 0
    %170 = vmatprep.subr.bf16.mxu0 0
    %171 = vmatpush1.bf16.msra.mxu0 0
    %172 = vmatprep.subr.bf16.mxu0 0
    %173 = vmatpush1.bf16.msra.mxu0 0
    %174 = vmatprep.subr.bf16.mxu0 0
    %175 = vmatpush1.bf16.msra.mxu0 0
    %176 = vmatprep.subr.bf16.mxu0 0
    %177 = vmatpush1.bf16.msra.mxu0 0
    %178 = vmatprep.subr.bf16.mxu0 0
    %179 = vmatpush1.bf16.msra.mxu0 0
    %180 = vmatprep.subr.bf16.mxu0 0
    %181 = vmatpush1.bf16.msra.mxu0 0
    %182 = vmatprep.subr.bf16.mxu0 0
    %183 = vmatpush1.bf16.msra.mxu0 0
    %184 = vmatprep.subr.bf16.mxu0 %v168
    %185 = vmatpush1.bf16.msra.mxu0 %v165
    %186 = vmatprep.subr.bf16.mxu0 0
    %187 = vmatpush2.bf16.msra.mxu0 0
    %188 = vmatprep.subr.bf16.mxu0 0
    %189 = vmatpush2.bf16.msra.mxu0 0
    %190 = vmatprep.subr.bf16.mxu0 0
    %191 = vmatpush2.bf16.msra.mxu0 0
    %192 = vmatprep.subr.bf16.mxu0 0
    %193 = vmatpush2.bf16.msra.mxu0 0
    %194 = vmatprep.subr.bf16.mxu0 0
    %195 = vmatpush2.bf16.msra.mxu0 0
    %196 = vmatprep.subr.bf16.mxu0 0
    %197 = vmatpush2.bf16.msra.mxu0 0
    %198 = vmatprep.subr.bf16.mxu0 0
    %199 = vmatpush2.bf16.msra.mxu0 0
    %200 = vmatprep.subr.bf16.mxu0 0
    %201 = vmatpush2.bf16.msra.mxu0 0
    %202 = vmatprep.mubr.bf16.mxu0 0
    %203 = vmatmul.mubr.bf16.gmra.mxu0 %v161
    %v204 = vpop.f32.mrf.mxu0
    %v205 = vadd.f32 %v130, %v204
    %v206 = vpop.f32.mrf.mxu0
    %v207 = vadd.f32 %v132, %v206
    %v208 = vpop.f32.mrf.mxu0
    %v209 = vpop.f32.mrf.mxu0
    %210 = vdwg.mxu0
    %v211 = vld [vmem:[%s4] sm:$0x3]
    %v213 = vlaneseq
    %v214 = vshrl.u32 %v213, 7
    %v215 = vsub.s32 0, %v214
    %v216 = vrot.slane %v211, %v215
    %v217 = vlaneseq
    %v218 = vshrl.u32 %v217, 7
    %v219 = vsub.s32 1, %v218
    %v220 = vrot.slane %v211, %v219
    %v223 = vadd.f32 %v205, %v216
    %v224 = vadd.f32 %v207, %v220
    %v225 = vmax.f32 %v223, 0.0
    %v226 = vmax.f32 %v224, 0.0
    %v227 = vpack.c.bf16 %v225, %v225
    %v228 = vpack.c.bf16 %v226, %v226
    %v229 = vld [vmem:[#allocation5] sm:$0xff]
    %v230 = vld [vmem:[#allocation5 + $0x8] sm:$0xff]
    %v231 = vld [vmem:[#allocation5 + $0x10] sm:$0xff]
    %v232 = vld [vmem:[#allocation5 + $0x18] sm:$0xff]
    %v233 = vld [vmem:[#allocation5 + $0x20] sm:$0xff]
    %v234 = vld [vmem:[#allocation5 + $0x28] sm:$0xff]
    %v235 = vld [vmem:[#allocation5 + $0x30] sm:$0xff]
    %v236 = vld [vmem:[#allocation5 + $0x38] sm:$0xff]
    %v237 = vld [vmem:[#allocation5 + $0x40] sm:$0xff]
    %v238 = vld [vmem:[#allocation5 + $0x48] sm:$0xff]
    %v239 = vld [vmem:[#allocation5 + $0x50] sm:$0xff]
    %v240 = vld [vmem:[#allocation5 + $0x58] sm:$0xff]
    %v241 = vld [vmem:[#allocation5 + $0x60] sm:$0xff]
    %v242 = vld [vmem:[#allocation5 + $0x68] sm:$0xff]
    %v243 = vld [vmem:[#allocation5 + $0x70] sm:$0xff]
    %v244 = vld [vmem:[#allocation5 + $0x78] sm:$0xff]
    %v245 = vld [vmem:[#allocation5 + $0x80] sm:$0xff]
    %v246 = vld [vmem:[#allocation5 + $0x88] sm:$0xff]
    %v247 = vld [vmem:[#allocation5 + $0x90] sm:$0xff]
    %v248 = vld [vmem:[#allocation5 + $0x98] sm:$0xff]
    %v249 = vld [vmem:[#allocation5 + $0xa0] sm:$0xff]
    %v250 = vld [vmem:[#allocation5 + $0xa8] sm:$0xff]
    %v251 = vld [vmem:[#allocation5 + $0xb0] sm:$0xff]
    %v252 = vld [vmem:[#allocation5 + $0xb8] sm:$0xff]
    %v253 = vld [vmem:[#allocation5 + $0xc0] sm:$0xff]
    %v254 = vld [vmem:[#allocation5 + $0xc8] sm:$0xff]
    %v255 = vld [vmem:[#allocation5 + $0xd0] sm:$0xff]
    %v256 = vld [vmem:[#allocation5 + $0xd8] sm:$0xff]
    %v257 = vld [vmem:[#allocation5 + $0xe0] sm:$0xff]
    %v258 = vld [vmem:[#allocation5 + $0xe8] sm:$0xff]
    %v259 = vld [vmem:[#allocation5 + $0xf0] sm:$0xff]
    %v260 = vld [vmem:[#allocation5 + $0xf8] sm:$0xff]
    %v261 = vld [vmem:[%s6] sm:$0x3]
    %v263 = vlaneseq
    %v264 = vshrl.u32 %v263, 7
    %v265 = vsub.s32 0, %v264
    %v266 = vrot.slane %v261, %v265
    %v267 = vlaneseq
    %v268 = vshrl.u32 %v267, 7
    %v269 = vsub.s32 1, %v268
    %v270 = vrot.slane %v261, %v269
    %v305 = vunpack.c.l.b16 %v229
    %v306 = vunpack.c.h.b16 %v229
    %v307 = vunpack.c.l.b16 %v230
    %v308 = vunpack.c.h.b16 %v230
    %v309 = vunpack.c.l.b16 %v231
    %v310 = vunpack.c.h.b16 %v231
    %v311 = vunpack.c.l.b16 %v232
    %v312 = vunpack.c.h.b16 %v232
    %v313 = vunpack.c.l.b16 %v233
    %v314 = vunpack.c.h.b16 %v233
    %v315 = vunpack.c.l.b16 %v234
    %v316 = vunpack.c.h.b16 %v234
    %v317 = vunpack.c.l.b16 %v235
    %v318 = vunpack.c.h.b16 %v235
    %v319 = vunpack.c.l.b16 %v236
    %v320 = vunpack.c.h.b16 %v236
    %v321 = vunpack.c.l.b16 %v237
    %v322 = vunpack.c.h.b16 %v237
    %v323 = vunpack.c.l.b16 %v238
    %v324 = vunpack.c.h.b16 %v238
    %v325 = vunpack.c.l.b16 %v239
    %v326 = vunpack.c.h.b16 %v239
    %v327 = vunpack.c.l.b16 %v240
    %v328 = vunpack.c.h.b16 %v240
    %v329 = vunpack.c.l.b16 %v241
    %v330 = vunpack.c.h.b16 %v241
    %v331 = vunpack.c.l.b16 %v242
    %v332 = vunpack.c.h.b16 %v242
    %v333 = vunpack.c.l.b16 %v243
    %v334 = vunpack.c.h.b16 %v243
    %v335 = vunpack.c.l.b16 %v244
    %v336 = vunpack.c.h.b16 %v244
    %v337 = vunpack.c.l.b16 %v245
    %v338 = vunpack.c.h.b16 %v245
    %v339 = vunpack.c.l.b16 %v246
    %v340 = vunpack.c.h.b16 %v246
    %v341 = vunpack.c.l.b16 %v247
    %v342 = vunpack.c.h.b16 %v247
    %v343 = vunpack.c.l.b16 %v248
    %v344 = vunpack.c.h.b16 %v248
    %v345 = vunpack.c.l.b16 %v249
    %v346 = vunpack.c.h.b16 %v249
    %v347 = vunpack.c.l.b16 %v250
    %v348 = vunpack.c.h.b16 %v250
    %v349 = vunpack.c.l.b16 %v251
    %v350 = vunpack.c.h.b16 %v251
    %v351 = vunpack.c.l.b16 %v252
    %v352 = vunpack.c.h.b16 %v252
    %v353 = vunpack.c.l.b16 %v253
    %v354 = vunpack.c.h.b16 %v253
    %v355 = vunpack.c.l.b16 %v254
    %v356 = vunpack.c.h.b16 %v254
    %v357 = vunpack.c.l.b16 %v255
    %v358 = vunpack.c.h.b16 %v255
    %v359 = vunpack.c.l.b16 %v256
    %v360 = vunpack.c.h.b16 %v256
    %v361 = vunpack.c.l.b16 %v257
    %v362 = vunpack.c.h.b16 %v257
    %v363 = vunpack.c.l.b16 %v258
    %v364 = vunpack.c.h.b16 %v258
    %v365 = vunpack.c.l.b16 %v259
    %v366 = vunpack.c.h.b16 %v259
    %v367 = vunpack.c.l.b16 %v260
    %v368 = vunpack.c.h.b16 %v260
    %v369 = vpack.c.b16 %v307, %v305
    %v370 = vpack.c.b16 %v308, %v306
    %v371 = vpack.c.b16 %v311, %v309
    %v372 = vpack.c.b16 %v312, %v310
    %v373 = vpack.c.b16 %v315, %v313
    %v374 = vpack.c.b16 %v316, %v314
    %v375 = vpack.c.b16 %v319, %v317
    %v376 = vpack.c.b16 %v320, %v318
    %v377 = vpack.c.b16 %v323, %v321
    %v378 = vpack.c.b16 %v324, %v322
    %v379 = vpack.c.b16 %v327, %v325
    %v380 = vpack.c.b16 %v328, %v326
    %v381 = vpack.c.b16 %v331, %v329
    %v382 = vpack.c.b16 %v332, %v330
    %v383 = vpack.c.b16 %v335, %v333
    %v384 = vpack.c.b16 %v336, %v334
    %v385 = vpack.c.b16 %v339, %v337
    %v386 = vpack.c.b16 %v340, %v338
    %v387 = vpack.c.b16 %v343, %v341
    %v388 = vpack.c.b16 %v344, %v342
    %v389 = vpack.c.b16 %v347, %v345
    %v390 = vpack.c.b16 %v348, %v346
    %v391 = vpack.c.b16 %v351, %v349
    %v392 = vpack.c.b16 %v352, %v350
    %v393 = vpack.c.b16 %v355, %v353
    %v394 = vpack.c.b16 %v356, %v354
    %v395 = vpack.c.b16 %v359, %v357
    %v396 = vpack.c.b16 %v360, %v358
    %v397 = vpack.c.b16 %v363, %v361
    %v398 = vpack.c.b16 %v364, %v362
    %v399 = vpack.c.b16 %v367, %v365
    %v400 = vpack.c.b16 %v368, %v366
    %433 = vmatprep.subr.bf16.mxu0 %v384
    %434 = vmatpush1.bf16.msra.mxu0 %v383
    %435 = vmatprep.subr.bf16.mxu0 %v382
    %436 = vmatpush1.bf16.msra.mxu0 %v381
    %437 = vmatprep.subr.bf16.mxu0 %v380
    %438 = vmatpush1.bf16.msra.mxu0 %v379
    %439 = vmatprep.subr.bf16.mxu0 %v378
    %440 = vmatpush1.bf16.msra.mxu0 %v377
    %441 = vmatprep.subr.bf16.mxu0 %v376
    %442 = vmatpush1.bf16.msra.mxu0 %v375
    %443 = vmatprep.subr.bf16.mxu0 %v374
    %444 = vmatpush1.bf16.msra.mxu0 %v373
    %445 = vmatprep.subr.bf16.mxu0 %v372
    %446 = vmatpush1.bf16.msra.mxu0 %v371
    %447 = vmatprep.subr.bf16.mxu0 %v370
    %448 = vmatpush1.bf16.msra.mxu0 %v369
    %449 = vmatprep.subr.bf16.mxu0 %v400
    %450 = vmatpush2.bf16.msra.mxu0 %v399
    %451 = vmatprep.subr.bf16.mxu0 %v398
    %452 = vmatpush2.bf16.msra.mxu0 %v397
    %453 = vmatprep.subr.bf16.mxu0 %v396
    %454 = vmatpush2.bf16.msra.mxu0 %v395
    %455 = vmatprep.subr.bf16.mxu0 %v394
    %456 = vmatpush2.bf16.msra.mxu0 %v393
    %457 = vmatprep.subr.bf16.mxu0 %v392
    %458 = vmatpush2.bf16.msra.mxu0 %v391
    %459 = vmatprep.subr.bf16.mxu0 %v390
    %460 = vmatpush2.bf16.msra.mxu0 %v389
    %461 = vmatprep.subr.bf16.mxu0 %v388
    %462 = vmatpush2.bf16.msra.mxu0 %v387
    %463 = vmatprep.subr.bf16.mxu0 %v386
    %464 = vmatpush2.bf16.msra.mxu0 %v385
    %465 = vmatprep.mubr.bf16.mxu0 %v228
    %466 = vmatmul.mubr.bf16.gmra.mxu0 %v227
    %v467 = vpop.f32.mrf.mxu0
    %v468 = vadd.f32 %v266, %v467
    %v469 = vpop.f32.mrf.mxu0
    %v470 = vadd.f32 %v270, %v469
    %v471 = vpop.f32.mrf.mxu0
    %v472 = vpop.f32.mrf.mxu0
    %473 = vdwg.mxu0
    %v474 = vmax.f32 %v468, 0.0
    %v475 = vmax.f32 %v470, 0.0
    %v476 = vpack.c.bf16 %v474, %v474
    %v477 = vpack.c.bf16 %v475, %v475
    %v478 = vld [vmem:[#allocation7] sm:$0xf]
    %v479 = vld [vmem:[#allocation7 + $0x4] sm:$0xf]
    %v480 = vld [vmem:[#allocation7 + $0x8] sm:$0xf]
    %v481 = vld [vmem:[#allocation7 + $0xc] sm:$0xf]
    %v482 = vld [vmem:[#allocation7 + $0x10] sm:$0xf]
    %v483 = vld [vmem:[#allocation7 + $0x14] sm:$0xf]
    %v484 = vld [vmem:[#allocation7 + $0x18] sm:$0xf]
    %v485 = vld [vmem:[#allocation7 + $0x1c] sm:$0xf]
    %v486 = vld [vmem:[#allocation7 + $0x20] sm:$0xf]
    %v487 = vld [vmem:[#allocation7 + $0x24] sm:$0xf]
    %v488 = vld [vmem:[#allocation7 + $0x28] sm:$0xf]
    %v489 = vld [vmem:[#allocation7 + $0x2c] sm:$0xf]
    %v490 = vld [vmem:[#allocation7 + $0x30] sm:$0xf]
    %v491 = vld [vmem:[#allocation7 + $0x34] sm:$0xf]
    %v492 = vld [vmem:[#allocation7 + $0x38] sm:$0xf]
    %v493 = vld [vmem:[#allocation7 + $0x3c] sm:$0xf]
    %v494 = vld [vmem:[#allocation7 + $0x40] sm:$0xf]
    %v495 = vld [vmem:[#allocation7 + $0x44] sm:$0xf]
    %v496 = vld [vmem:[#allocation7 + $0x48] sm:$0xf]
    %v497 = vld [vmem:[#allocation7 + $0x4c] sm:$0xf]
    %v498 = vld [vmem:[#allocation7 + $0x50] sm:$0xf]
    %v499 = vld [vmem:[#allocation7 + $0x54] sm:$0xf]
    %v500 = vld [vmem:[#allocation7 + $0x58] sm:$0xf]
    %v501 = vld [vmem:[#allocation7 + $0x5c] sm:$0xf]
    %v502 = vld [vmem:[#allocation7 + $0x60] sm:$0xf]
    %v503 = vld [vmem:[#allocation7 + $0x64] sm:$0xf]
    %v504 = vld [vmem:[#allocation7 + $0x68] sm:$0xf]
    %v505 = vld [vmem:[#allocation7 + $0x6c] sm:$0xf]
    %v506 = vld [vmem:[#allocation7 + $0x70] sm:$0xf]
    %v507 = vld [vmem:[#allocation7 + $0x74] sm:$0xf]
    %v508 = vld [vmem:[#allocation7 + $0x78] sm:$0xf]
    %v509 = vld [vmem:[#allocation7 + $0x7c] sm:$0xf]
    %v510 = vld [vmem:[%s8] sm:$0x1]
    %v512 = vlaneseq
    %v513 = vshrl.u32 %v512, 7
    %v514 = vsub.s32 0, %v513
    %v515 = vrot.slane %v510, %v514
    %v549 = vunpack.c.l.b16 %v478
    %v550 = vunpack.c.l.b16 %v479
    %v551 = vunpack.c.l.b16 %v480
    %v552 = vunpack.c.l.b16 %v481
    %v553 = vunpack.c.l.b16 %v482
    %v554 = vunpack.c.l.b16 %v483
    %v555 = vunpack.c.l.b16 %v484
    %v556 = vunpack.c.l.b16 %v485
    %v557 = vunpack.c.l.b16 %v486
    %v558 = vunpack.c.l.b16 %v487
    %v559 = vunpack.c.l.b16 %v488
    %v560 = vunpack.c.l.b16 %v489
    %v561 = vunpack.c.l.b16 %v490
    %v562 = vunpack.c.l.b16 %v491
    %v563 = vunpack.c.l.b16 %v492
    %v564 = vunpack.c.l.b16 %v493
    %v565 = vunpack.c.l.b16 %v494
    %v566 = vunpack.c.l.b16 %v495
    %v567 = vunpack.c.l.b16 %v496
    %v568 = vunpack.c.l.b16 %v497
    %v569 = vunpack.c.l.b16 %v498
    %v570 = vunpack.c.l.b16 %v499
    %v571 = vunpack.c.l.b16 %v500
    %v572 = vunpack.c.l.b16 %v501
    %v573 = vunpack.c.l.b16 %v502
    %v574 = vunpack.c.l.b16 %v503
    %v575 = vunpack.c.l.b16 %v504
    %v576 = vunpack.c.l.b16 %v505
    %v577 = vunpack.c.l.b16 %v506
    %v578 = vunpack.c.l.b16 %v507
    %v579 = vunpack.c.l.b16 %v508
    %v580 = vunpack.c.l.b16 %v509
    %v581 = vpack.c.b16 %v550, %v549
    %v582 = vpack.c.b16 %v552, %v551
    %v583 = vpack.c.b16 %v554, %v553
    %v584 = vpack.c.b16 %v556, %v555
    %v585 = vpack.c.b16 %v558, %v557
    %v586 = vpack.c.b16 %v560, %v559
    %v587 = vpack.c.b16 %v562, %v561
    %v588 = vpack.c.b16 %v564, %v563
    %v589 = vpack.c.b16 %v566, %v565
    %v590 = vpack.c.b16 %v568, %v567
    %v591 = vpack.c.b16 %v570, %v569
    %v592 = vpack.c.b16 %v572, %v571
    %v593 = vpack.c.b16 %v574, %v573
    %v594 = vpack.c.b16 %v576, %v575
    %v595 = vpack.c.b16 %v578, %v577
    %v596 = vpack.c.b16 %v580, %v579
    %613 = vmatprep.subr.bf16.mxu0 0
    %614 = vmatpush1.bf16.msra.mxu0 %v588
    %615 = vmatprep.subr.bf16.mxu0 0
    %616 = vmatpush1.bf16.msra.mxu0 %v587
    %617 = vmatprep.subr.bf16.mxu0 0
    %618 = vmatpush1.bf16.msra.mxu0 %v586
    %619 = vmatprep.subr.bf16.mxu0 0
    %620 = vmatpush1.bf16.msra.mxu0 %v585
    %621 = vmatprep.subr.bf16.mxu0 0
    %622 = vmatpush1.bf16.msra.mxu0 %v584
    %623 = vmatprep.subr.bf16.mxu0 0
    %624 = vmatpush1.bf16.msra.mxu0 %v583
    %625 = vmatprep.subr.bf16.mxu0 0
    %626 = vmatpush1.bf16.msra.mxu0 %v582
    %627 = vmatprep.subr.bf16.mxu0 0
    %628 = vmatpush1.bf16.msra.mxu0 %v581
    %629 = vmatprep.subr.bf16.mxu0 0
    %630 = vmatpush2.bf16.msra.mxu0 %v596
    %631 = vmatprep.subr.bf16.mxu0 0
    %632 = vmatpush2.bf16.msra.mxu0 %v595
    %633 = vmatprep.subr.bf16.mxu0 0
    %634 = vmatpush2.bf16.msra.mxu0 %v594
    %635 = vmatprep.subr.bf16.mxu0 0
    %636 = vmatpush2.bf16.msra.mxu0 %v593
    %637 = vmatprep.subr.bf16.mxu0 0
    %638 = vmatpush2.bf16.msra.mxu0 %v592
    %639 = vmatprep.subr.bf16.mxu0 0
    %640 = vmatpush2.bf16.msra.mxu0 %v591
    %641 = vmatprep.subr.bf16.mxu0 0
    %642 = vmatpush2.bf16.msra.mxu0 %v590
    %643 = vmatprep.subr.bf16.mxu0 0
    %644 = vmatpush2.bf16.msra.mxu0 %v589
    %645 = vmatprep.mubr.bf16.mxu0 %v477
    %646 = vmatmul.mubr.bf16.gmra.mxu0 %v476
    %v647 = vpop.f32.mrf.mxu0
    %v648 = vadd.f32 %v515, %v647
    %v649 = vpop.f32.mrf.mxu0
    %v650 = vpop.f32.mrf.mxu0
    %v651 = vpop.f32.mrf.mxu0
    %652 = vdwg.mxu0
    %653 = vst [vmem:[#allocation8] sm:$0xff] %v648
    // Predicated region
    $region50: #{tpu_custom_call.1} parent=1 // pred_check
      _
    $region51: #{tpu_custom_call.1} parent=1 // pred_check_branch
      %655 = sbr.rel (0) target = $region53
    $region52: #{tpu_custom_call.1} parent=1 // pred_region
      %s657 = ssub.s32 128, 128
      %658 = vsyncadd [#allocation4], %s657
      %s660 = sshll.u32 [#allocation8], 4
      %s661 = int_to_ptr.vmem [resolvable:$true] %s660
      %663 = dma.vmem_to_hbm [thread:$0]  %s661, 128, %s9, [#allocation4]
    $region53: #{tpu_custom_call.1} parent=1 // pred_fallthru
      _
    // Predicated region
    $region54: #{tpu_custom_call.1} parent=1 // pred_check
      _
    $region55: #{tpu_custom_call.1} parent=1 // pred_check_branch
      %665 = sbr.rel (0) target = $region57
    $region56: #{tpu_custom_call.1} parent=1 // pred_region
      %666 = dma.done [#allocation4], 128
    $region57: #{tpu_custom_call.1} parent=1 // pred_fallthru
      _
    %667 = vsyncpa [#allocation3], 1
    %668 = vsyncpa [#allocation6], 1
    %669 = vsyncpa [#allocation4], 1

</llo_original>
